<compile_context>
chip_gen: v6e
topology: v6e:2x2x1
jax: 0.10.0
libtpu: 0.0.40
codegen_flags: <defaults>
</compile_context>

<pallas_src>
import math
import numpy as np
import jax
import jax.numpy as jnp
from jax.experimental import pallas as pl
from jax.experimental.pallas import tpu as pltpu

# ----------------------------- config -----------------------------
MAX_CAV = 2
ANCHOR_NUM = 2
P_MAX = 8                      # max points per pillar
NX, NY = 16, 16                # BEV grid
VX, VY, VZ = 0.4, 0.4, 4.0
PC_RANGE = [0.0, -3.2, -3.0, 6.4, 3.2, 1.0]
X_OFF = VX / 2 + PC_RANGE[0]
Y_OFF = VY / 2 + PC_RANGE[1]
Z_OFF = VZ / 2 + PC_RANGE[2]
PFN_OUT = 64
H2, W2 = NY // 2, NX // 2      # backbone output spatial size (8, 8)
HW2 = H2 * W2                  # 64
C2D = 256                      # fused BEV channels (128 + 128)
HEAD_W = 128                   # lane-dense padded width of fused cls+reg head


def _bcast_spec(shape):
    """Full-array block, identical for every grid step (fetched once)."""
    zeros = (0,) * len(shape)
    return pl.BlockSpec(tuple(shape), lambda *_args, _z=zeros: _z)


# ----------------------------- PFN kernel -----------------------------

def _pfn_kernel(P):
    def kernel(x_ref, w_ref, s_ref, t_ref, o_ref):
        # x: (P*Nvp/2, 20) f32 (points-major, 2 pillars per row),
        # w: block-diag (20, 128) bf16  ->  one lane-dense MXU matmul.
        h = jnp.dot(x_ref[...].astype(jnp.bfloat16), w_ref[...],
                    preferred_element_type=jnp.float32)          # (P*Nvp/2, 128)
        h = jnp.maximum(h * s_ref[...] + t_ref[...], 0.0)        # folded BN + ReLU
        M2 = h.shape[0] // P
        # max over the P points: chained VPU maxes over contiguous slabs.
        m = h[0:M2]
        for p in range(1, P):
            m = jnp.maximum(m, h[p * M2:(p + 1) * M2])
        o_ref[...] = m                                           # lane-dense store
    return kernel


def pfn_forward(feats10, kp):
    Nv, P, F = feats10.shape
    Nvp = ((Nv + 15) // 16) * 16
    x_pm = jnp.transpose(feats10, (1, 0, 2))                     # (P, Nv, F) points-major
    if Nvp != Nv:
        x_pm = jnp.pad(x_pm, ((0, 0), (0, Nvp - Nv), (0, 0)))
    # pack two pillars per row -> (P*Nvp/2, 2F)
    x2d = x_pm.reshape(P, Nvp // 2, 2 * F).reshape(P * (Nvp // 2), 2 * F)
    out = pl.pallas_call(
        _pfn_kernel(P),
        out_shape=jax.ShapeDtypeStruct((Nvp // 2, 2 * PFN_OUT), jnp.float32),
        grid=(1,),
        in_specs=[_bcast_spec(x2d.shape),
                  _bcast_spec(kp['pfn_w'].shape),
                  _bcast_spec(kp['pfn_s'].shape),
                  _bcast_spec(kp['pfn_t'].shape)],
        out_specs=pl.BlockSpec((Nvp // 2, 2 * PFN_OUT), lambda i: (0, 0)),
    )(x2d, kp['pfn_w'], kp['pfn_s'], kp['pfn_t'])
    return out.reshape(Nvp, PFN_OUT)[:Nv]


# ----------------------------- fused backbone + attention + heads -----------------------------

def _im2col_frames(x_frames, H, W):
    """Frame-batched im2col: list of per-frame (H*W, Cin) f32 -> (L*H*W, 9*Cin) bf16."""
    HW = H * W
    Cin = x_frames[0].shape[-1]
    pad = W + 1
    col = jax.lax.broadcasted_iota(jnp.int32, (HW, 1), 0) % W
    mask_l = col >= 1            # valid taps for b == -1 (hoisted out of the tap loop)
    mask_r = col < (W - 1)       # valid taps for b == +1
    frames = []
    for x in x_frames:
        z = jnp.zeros((pad, Cin), jnp.float32)
        xp = jnp.concatenate([z, x, z], axis=0)                  # (HW + 2*pad, Cin)
        slabs = []
        for a in (-1, 0, 1):
            for b in (-1, 0, 1):
                off = pad + a * W + b
                xs = xp[off:off + HW, :]                         # static slice
                if b == -1:
                    xs = jnp.where(mask_l, xs, 0.0)
                elif b == 1:
                    xs = jnp.where(mask_r, xs, 0.0)
                slabs.append(xs)
        frames.append(jnp.concatenate(slabs, axis=-1))           # (HW, 9*Cin)
    return jnp.concatenate(frames, axis=0).astype(jnp.bfloat16)  # (L*HW, 9*Cin)


def _conv3x3(x_frames, H, W, w, st, sel=None):
    """3x3 conv (pad=1) as ONE big-K MXU dot on the frame-batched im2col matrix.

    `sel` (optional block-diag 0/1 bf16 matrix) applies stride-2 row selection to
    the bf16 im2col matrix BEFORE the conv dot (exact, and shrinks the main dot).
    Folded BN + ReLU epilogue in f32.
    """
    X = _im2col_frames(x_frames, H, W)                           # (L*HW, 9Cin) bf16
    if sel is not None:
        X = jnp.dot(sel, X, preferred_element_type=jnp.float32).astype(jnp.bfloat16)
    acc = jnp.dot(X, w, preferred_element_type=jnp.float32)      # (Mout, Cout) f32
    return jnp.maximum(acc * st[0:1] + st[1:2], 0.0)


def _fused_kernel(L):
    inv = 1.0 / math.sqrt(C2D)

    def kernel(rl_ref, canvas_ref,
               w00_ref, st00_ref, w01_ref, st01_ref,
               w10_ref, st10_ref, w11_ref, st11_ref,
               wd0_ref, std0_ref, wd1_ref, std1_ref,
               s1_ref, s2_ref, e_ref, wh_ref, bh_ref,
               o_ref):
        xs = [canvas_ref[0, l] for l in range(L)]                # L x (256, 64) f32

        # ---- block 0: 16x16 -> 8x8, 64ch (frames batched into M) ----
        y = _conv3x3(xs, NY, NX, w00_ref[...], st00_ref[...], sel=s1_ref[...])   # (L*64, 64)
        y = _conv3x3([y[l * HW2:(l + 1) * HW2] for l in range(L)], H2, W2,
                     w01_ref[...], st01_ref[...])                                # (L*64, 64)

        # ---- deblock 0: ConvTranspose2d k=1 s=1 == 1x1 matmul ----
        std0 = std0_ref[...]
        up0 = jnp.dot(y.astype(jnp.bfloat16), wd0_ref[...],
                      preferred_element_type=jnp.float32)                        # (L*64, 128)
        up0 = jnp.maximum(up0 * std0[0:1] + std0[1:2], 0.0)

        # ---- block 1: 8x8 -> 4x4, 128ch ----
        y = _conv3x3([y[l * HW2:(l + 1) * HW2] for l in range(L)], H2, W2,
                     w10_ref[...], st10_ref[...], sel=s2_ref[...])               # (L*16, 128)
        y = _conv3x3([y[l * 16:(l + 1) * 16] for l in range(L)], H2 // 2, W2 // 2,
                     w11_ref[...], st11_ref[...])                                # (L*16, 128)

        # ---- deblock 1: ConvTranspose2d k=2 s=2, placement-before-dot (exact) ----
        ybf = y.astype(jnp.bfloat16)
        e = e_ref[...]                                           # (4, L*64, L*16) bf16 0/1
        pieces = [jnp.dot(e[pq], ybf, preferred_element_type=jnp.float32
                          ).astype(jnp.bfloat16) for pq in range(4)]
        std1 = std1_ref[...]
        up1 = jnp.dot(jnp.concatenate(pieces, axis=-1), wd1_ref[...],
                      preferred_element_type=jnp.float32)                        # (L*64, 128)
        up1 = jnp.maximum(up1 * std1[0:1] + std1[1:2], 0.0)

        feat = jnp.concatenate([up0, up1], axis=-1)              # (L*64, 256) f32

        # ---- AttFusion over CAVs (ego = local slot 0), mask from record_len (SMEM) ----
        n = rl_ref[pl.program_id(0)]
        ego = feat[0:HW2]
        if L == 2:
            # exact 2-way softmax in sigmoid form: no lane concat / XLU reductions.
            oth = feat[HW2:2 * HW2]
            s0 = jnp.sum(ego * ego, axis=-1, keepdims=True) * inv
            s1 = jnp.sum(oth * ego, axis=-1, keepdims=True) * inv
            m1 = jnp.where(n > 1, 0.0, -1e9)
            p1 = 1.0 / (1.0 + jnp.exp(-(s1 - s0 + m1)))
            fused = ego + p1 * (oth - ego)
        else:
            scores = []
            for l in range(L):
                ml = jnp.where(n > l, 0.0, -1e9)
                scores.append(jnp.sum(feat[l * HW2:(l + 1) * HW2] * ego, axis=-1,
                                      keepdims=True) * inv + ml)
            mx = scores[0]
            for s in scores[1:]:
                mx = jnp.maximum(mx, s)
            es = [jnp.exp(s - mx) for s in scores]
            den = es[0]
            for e_ in es[1:]:
                den = den + e_
            pinv = pl.reciprocal(den, approx=True)
            fused = es[0] * pinv * ego
            for l in range(1, L):
                fused = fused + es[l] * pinv * feat[l * HW2:(l + 1) * HW2]

        # ---- fused cls/reg 1x1 heads, lane-dense (padded to 128) output store ----
        out = jnp.dot(fused.astype(jnp.bfloat16), wh_ref[...],
                      preferred_element_type=jnp.float32) + bh_ref[...]
        o_ref[0] = out
    return kernel


def fused_forward(canvas, record_len_dev, kp):
    """canvas: (B, MAX_CAV, NY*NX, 64) f32 -> heads (B, 64, 128) f32, one kernel."""
    B, L = canvas.shape[0], canvas.shape[1]
    weight_args = [kp['w00'], kp['st00'], kp['w01'], kp['st01'],
                   kp['w10'], kp['st10'], kp['w11'], kp['st11'],
                   kp['wd0'], kp['std0'], kp['wd1'], kp['std1'],
                   kp['S1'], kp['S2'], kp['E'], kp['w_heads'], kp['b_heads']]
    in_specs = [pl.BlockSpec((1, L, NY * NX, PFN_OUT), lambda b, rl: (b, 0, 0, 0))]
    in_specs += [_bcast_spec(a.shape) for a in weight_args]
    return pl.pallas_call(
        _fused_kernel(L),
        out_shape=jax.ShapeDtypeStruct((B, HW2, HEAD_W), jnp.float32),
        grid_spec=pltpu.PrefetchScalarGridSpec(
            num_scalar_prefetch=1,
            grid=(B,),
            in_specs=in_specs,
            out_specs=pl.BlockSpec((1, HW2, HEAD_W), lambda b, rl: (b, 0, 0)),
        ),
        compiler_params=pltpu.CompilerParams(dimension_semantics=("parallel",)),
    )(record_len_dev, canvas, *weight_args)


# ----------------------------- PillarVFE feature glue -----------------------------

def build_pillar_features(vf, vc, vn):
    """vf: (Nv,P,4) float, vc: (Nv,4) int [b,z,y,x], vn: (Nv,) int -> (Nv,P,10)."""
    vf = vf.astype(jnp.float32)
    num = jnp.maximum(vn, 1).astype(jnp.float32).reshape(-1, 1, 1)   # clamp empty pillars
    points_mean = jnp.sum(vf[:, :, :3], axis=1, keepdims=True) / num
    f_cluster = vf[:, :, :3] - points_mean
    cx = vc[:, 3:4].astype(jnp.float32) * VX + X_OFF
    cy = vc[:, 2:3].astype(jnp.float32) * VY + Y_OFF
    cz = vc[:, 1:2].astype(jnp.float32) * VZ + Z_OFF
    f_center = jnp.stack([vf[:, :, 0] - cx, vf[:, :, 1] - cy, vf[:, :, 2] - cz], axis=-1)
    features = jnp.concatenate([vf, f_cluster, f_center], axis=-1)   # (Nv,P,10)
    mask = (jnp.arange(P_MAX)[None, :] < vn[:, None]).astype(jnp.float32)
    return features * mask[:, :, None]


# ----------------------------- parameters -----------------------------

def _init_bn(key, c):
    k1, k2, k3 = jax.random.split(key, 3)
    gamma = 1.0 + 0.1 * jax.random.normal(k1, (c,), jnp.float32)
    beta = 0.1 * jax.random.normal(k2, (c,), jnp.float32)
    mean = 0.1 * jax.random.normal(k3, (c,), jnp.float32)
    var = jnp.ones((c,), jnp.float32)
    eps = 1e-3
    scale = gamma / jnp.sqrt(var + eps)
    shift = beta - mean * scale
    return scale, shift


def build_raw_params(key):
    ks = jax.random.split(key, 24)
    p = {}
    # PillarVFE PFN: Linear(10,64,bias=False) + BN
    p['pfn_w'] = 0.1 * jax.random.normal(ks[0], (10, PFN_OUT), jnp.float32)
    p['pfn_s'], p['pfn_t'] = _init_bn(ks[1], PFN_OUT)
    # BaseBEVBackbone: layer_nums=[1,1], strides=[2,2], filters=[64,128],
    #                  upsample_strides=[1,2], num_upsample_filters=[128,128]
    p['b0c0_w'] = 0.05 * jax.random.normal(ks[2], (3, 3, 64, 64), jnp.float32)
    p['b0c0_s'], p['b0c0_t'] = _init_bn(ks[3], 64)
    p['b0c1_w'] = 0.05 * jax.random.normal(ks[4], (3, 3, 64, 64), jnp.float32)
    p['b0c1_s'], p['b0c1_t'] = _init_bn(ks[5], 64)
    p['b1c0_w'] = 0.05 * jax.random.normal(ks[6], (3, 3, 64, 128), jnp.float32)
    p['b1c0_s'], p['b1c0_t'] = _init_bn(ks[7], 128)
    p['b1c1_w'] = 0.05 * jax.random.normal(ks[8], (3, 3, 128, 128), jnp.float32)
    p['b1c1_s'], p['b1c1_t'] = _init_bn(ks[9], 128)
    # deblocks (ConvTranspose2d weight layout (Cin, Cout, k, k))
    p['d0_w'] = 0.05 * jax.random.normal(ks[10], (64, 128, 1, 1), jnp.float32)
    p['d0_s'], p['d0_t'] = _init_bn(ks[11], 128)
    p['d1_w'] = 0.05 * jax.random.normal(ks[12], (128, 128, 2, 2), jnp.float32)
    p['d1_s'], p['d1_t'] = _init_bn(ks[13], 128)
    # heads: 1x1 conv with bias (stored as (Cin, Cout))
    p['cls_w'] = 0.05 * jax.random.normal(ks[14], (256, ANCHOR_NUM), jnp.float32)
    p['cls_b'] = 0.1 * jax.random.normal(ks[15], (ANCHOR_NUM,), jnp.float32)
    p['reg_w'] = 0.05 * jax.random.normal(ks[16], (256, 7 * ANCHOR_NUM), jnp.float32)
    p['reg_b'] = 0.1 * jax.random.normal(ks[17], (7 * ANCHOR_NUM,), jnp.float32)
    return p


def prepare_kernel_params(p, L=MAX_CAV):
    """Fold params into kernel-ready layouts (bf16 weights, stacked BN, constants)."""
    kp = {}
    # PFN: block-diag weight packs two pillars per row for lane-dense compute/stores.
    w = p['pfn_w']
    wbd = jnp.zeros((2 * w.shape[0], 2 * PFN_OUT), jnp.float32)
    wbd = wbd.at[:w.shape[0], :PFN_OUT].set(w).at[w.shape[0]:, PFN_OUT:].set(w)
    kp['pfn_w'] = wbd.astype(jnp.bfloat16)
    kp['pfn_s'] = jnp.tile(p['pfn_s'], 2).reshape(1, 2 * PFN_OUT).astype(jnp.float32)
    kp['pfn_t'] = jnp.tile(p['pfn_t'], 2).reshape(1, 2 * PFN_OUT).astype(jnp.float32)

    def wcol(w_):                                   # (3,3,Cin,Cout) -> (9*Cin, Cout) bf16
        kh, kw, ci, co = w_.shape
        return w_.reshape(kh * kw * ci, co).astype(jnp.bfloat16)

    def st(s, t):                                   # stacked (2, C): [scale; shift]
        return jnp.stack([s, t]).astype(jnp.float32)

    kp['w00'] = wcol(p['b0c0_w']); kp['st00'] = st(p['b0c0_s'], p['b0c0_t'])
    kp['w01'] = wcol(p['b0c1_w']); kp['st01'] = st(p['b0c1_s'], p['b0c1_t'])
    kp['w10'] = wcol(p['b1c0_w']); kp['st10'] = st(p['b1c0_s'], p['b1c0_t'])
    kp['w11'] = wcol(p['b1c1_w']); kp['st11'] = st(p['b1c1_s'], p['b1c1_t'])
    kp['wd0'] = p['d0_w'][:, :, 0, 0].astype(jnp.bfloat16)          # (64, 128)
    kp['std0'] = st(p['d0_s'], p['d0_t'])
    kp['wd1'] = jnp.concatenate([p['d1_w'][:, :, pq // 2, pq % 2] for pq in range(4)],
                                axis=0).astype(jnp.bfloat16)        # (512, 128)
    kp['std1'] = st(p['d1_s'], p['d1_t'])

    # fused + lane-dense-padded cls/reg head weights
    wh = jnp.concatenate([p['cls_w'], p['reg_w']], axis=1)          # (256, 16)
    kp['w_heads'] = jnp.pad(wh, ((0, 0), (0, HEAD_W - wh.shape[1]))).astype(jnp.bfloat16)
    bh = jnp.concatenate([p['cls_b'], p['reg_b']])                  # (16,)
    kp['b_heads'] = jnp.pad(bh, (0, HEAD_W - bh.shape[0])).reshape(1, HEAD_W
                                                                   ).astype(jnp.float32)

    # constant 0/1 selection / placement matrices (exact in bf16),
    # block-diagonal over the MAX_CAV frame batch.
    def bdiag(m):
        r, c = m.shape
        out = np.zeros((L * r, L * c), np.float32)
        for l in range(L):
            out[l * r:(l + 1) * r, l * c:(l + 1) * c] = m
        return out

    S1 = np.zeros((HW2, NY * NX), np.float32)
    for o in range(HW2):
        ho, wo = o // W2, o % W2
        S1[o, (2 * ho) * NX + 2 * wo] = 1.0
    S2 = np.zeros((16, HW2), np.float32)
    for o in range(16):
        ho, wo = o // 4, o % 4
        S2[o, (2 * ho) * W2 + 2 * wo] = 1.0
    E = np.zeros((4, HW2, 16), np.float32)
    for pq in range(4):
        pp, qq = pq // 2, pq % 2
        for h in range(4):
            for w_ in range(4):
                E[pq, (2 * h + pp) * W2 + (2 * w_ + qq), h * 4 + w_] = 1.0
    kp['S1'] = jnp.asarray(bdiag(S1), jnp.bfloat16)                 # (L*64, L*256)
    kp['S2'] = jnp.asarray(bdiag(S2), jnp.bfloat16)                 # (L*16, L*64)
    kp['E'] = jnp.asarray(np.stack([bdiag(E[pq]) for pq in range(4)]),
                          jnp.bfloat16)                             # (4, L*64, L*16)
    return kp


# ----------------------------- full forward -----------------------------

def point_pillar_opv2v_forward(kp, data_dict):
    vf = data_dict['processed_lidar']['voxel_features']
    vc = data_dict['processed_lidar']['voxel_coords']
    vn = data_dict['processed_lidar']['voxel_num_points']
    record_len = np.asarray(data_dict['record_len'])
    B = len(record_len)
    # prior_encoding / spatial_correction_matrix / threshold are unused in the
    # reference forward as well.

    # ---- PillarVFE (glue + single lane-dense PFN kernel) ----
    feats10 = build_pillar_features(vf, vc, vn)
    pillar_feats = pfn_forward(feats10, kp)

    # ---- PointPillarScatter directly into the (sample, CAV-slot) padded canvas,
    #      so the fused kernel needs no host-side regroup/pad/stack. ----
    # TODO(synk): the data-dependent scatter itself stays in XLA (no clean Pallas
    # win at this size).
    frame_to_b = np.repeat(np.arange(B, dtype=np.int32), record_len)
    frame_to_l = np.concatenate([np.arange(n, dtype=np.int32) for n in record_len])
    b_idx = jnp.asarray(frame_to_b)[vc[:, 0]]
    l_idx = jnp.asarray(frame_to_l)[vc[:, 0]]
    flat_idx = vc[:, 2] * NX + vc[:, 3]
    canvas = jnp.zeros((B, MAX_CAV, NY * NX, PFN_OUT), jnp.float32)
    canvas = canvas.at[b_idx, l_idx, flat_idx].set(pillar_feats)

    # ---- fused BaseBEVBackbone + AttFusion + cls/reg heads (one kernel) ----
    rl_dev = jnp.asarray(record_len.astype(np.int32))
    heads = fused_forward(canvas, rl_dev, kp)                         # (B, 64, 128)

    psm = heads[:, :, :ANCHOR_NUM].reshape(B, H2, W2, ANCHOR_NUM).transpose(0, 3, 1, 2)
    rm = heads[:, :, ANCHOR_NUM:ANCHOR_NUM + 7 * ANCHOR_NUM]
    rm = rm.reshape(B, H2, W2, 7 * ANCHOR_NUM).transpose(0, 3, 1, 2)
    return {'psm': psm, 'rm': rm}


# ----------------------------- main -----------------------------

if __name__ == "__main__":
    key = jax.random.PRNGKey(0)
    kparam, kdata = jax.random.split(key)
    params = prepare_kernel_params(build_raw_params(kparam))

    record_len = np.array([2, 1], dtype=np.int32)     # 2 samples, 3 CAV frames total
    Nf = int(record_len.sum())
    Vper = 40
    Nv = Nf * Vper

    ks = jax.random.split(kdata, Nf + 2)
    coords = []
    for f in range(Nf):
        pos = jax.random.permutation(ks[f], NY * NX)[:Vper]   # unique pillar locations
        yy = (pos // NX).astype(jnp.int32)
        xx = (pos % NX).astype(jnp.int32)
        coords.append(jnp.stack([jnp.full((Vper,), f, jnp.int32),
                                 jnp.zeros((Vper,), jnp.int32), yy, xx], axis=1))
    voxel_coords = jnp.concatenate(coords, axis=0)                    # (Nv, 4)
    voxel_num_points = jax.random.randint(ks[Nf], (Nv,), 1, P_MAX + 1)
    voxel_features = jax.random.normal(ks[Nf + 1], (Nv, P_MAX, 4), jnp.float32)

    data_dict = {
        'processed_lidar': {
            'voxel_features': voxel_features,
            'voxel_coords': voxel_coords,
            'voxel_num_points': voxel_num_points,
        },
        'record_len': record_len,
        'spatial_correction_matrix': jnp.tile(jnp.eye(4, dtype=jnp.float32),
                                              (len(record_len), MAX_CAV, 1, 1)),
        'prior_encoding': jnp.zeros((len(record_len), MAX_CAV, 3), jnp.float32),
    }

    out = point_pillar_opv2v_forward(params, data_dict)
    jax.block_until_ready(out['psm'])
    jax.block_until_ready(out['rm'])
    assert out['psm'].shape == (2, ANCHOR_NUM, 8, 8)
    assert out['rm'].shape == (2, 7 * ANCHOR_NUM, 8, 8)
    assert bool(jnp.all(jnp.isfinite(out['psm']))) and bool(jnp.all(jnp.isfinite(out['rm'])))
    print("KERNEL_OK")
</pallas_src>

<mosaic_0001>
module attributes {stable_mosaic.version = 11 : i64} {
  func.func @kernel(%arg0: i32, %arg1: memref<512x20xf32, #tpu.memory_space<vmem>>, %arg2: memref<20x128xbf16, #tpu.memory_space<vmem>>, %arg3: memref<1x128xf32, #tpu.memory_space<vmem>>, %arg4: memref<1x128xf32, #tpu.memory_space<vmem>>, %arg5: memref<64x128xf32, #tpu.memory_space<vmem>>) attributes {dimension_semantics = [#tpu.dimension_semantics<arbitrary>], iteration_bounds = array<i64: 1>, scalar_prefetch = 0 : i64, scratch_operands = 0 : i64, tpu.core_type = #tpu.core_type<tc>, window_params = [{pipeline_mode = #tpu.pipeline_mode<synchronous>, transform_indices = @transform_0, window_bounds = array<i64: 512, 20>}, {pipeline_mode = #tpu.pipeline_mode<synchronous>, transform_indices = @transform_1, window_bounds = array<i64: 20, 128>}, {pipeline_mode = #tpu.pipeline_mode<synchronous>, transform_indices = @transform_2, window_bounds = array<i64: 1, 128>}, {pipeline_mode = #tpu.pipeline_mode<synchronous>, transform_indices = @transform_3, window_bounds = array<i64: 1, 128>}, {pipeline_mode = #tpu.pipeline_mode<synchronous>, transform_indices = @transform_4, window_bounds = array<i64: 64, 128>}]} {
    %c0 = arith.constant 0 : index
    %c0_0 = arith.constant 0 : index
    %0 = vector.load %arg1[%c0, %c0_0] : memref<512x20xf32, #tpu.memory_space<vmem>>, vector<512x20xf32>
    %1 = arith.truncf %0 : vector<512x20xf32> to vector<512x20xbf16>
    %c0_1 = arith.constant 0 : index
    %c0_2 = arith.constant 0 : index
    %2 = vector.load %arg2[%c0_1, %c0_2] : memref<20x128xbf16, #tpu.memory_space<vmem>>, vector<20x128xbf16>
    %cst = arith.constant dense<0.000000e+00> : vector<512x128xf32>
    %3 = tpu.matmul %1, %2, %cst {dimension_numbers = #tpu.dot_dimension_numbers<[1], [0], [0], [1], [0, 0, 1, 1], [], []>} : vector<512x20xbf16>, vector<20x128xbf16>, vector<512x128xf32> -> vector<512x128xf32>
    %c0_3 = arith.constant 0 : index
    %c0_4 = arith.constant 0 : index
    %4 = vector.load %arg3[%c0_3, %c0_4] : memref<1x128xf32, #tpu.memory_space<vmem>>, vector<1x128xf32>
    %5 = vector.broadcast %4 : vector<1x128xf32> to vector<512x128xf32>
    %6 = arith.mulf %3, %5 : vector<512x128xf32>
    %c0_5 = arith.constant 0 : index
    %c0_6 = arith.constant 0 : index
    %7 = vector.load %arg4[%c0_5, %c0_6] : memref<1x128xf32, #tpu.memory_space<vmem>>, vector<1x128xf32>
    %8 = vector.broadcast %7 : vector<1x128xf32> to vector<512x128xf32>
    %9 = arith.addf %6, %8 : vector<512x128xf32>
    %cst_7 = arith.constant 0.000000e+00 : f32
    %10 = vector.broadcast %cst_7 : f32 to vector<512x128xf32>
    %11 = arith.maximumf %9, %10 : vector<512x128xf32>
    %12 = vector.extract_strided_slice %11 {offsets = [0, 0], sizes = [64, 128], strides = [1, 1]} : vector<512x128xf32> to vector<64x128xf32>
    %13 = vector.extract_strided_slice %11 {offsets = [64, 0], sizes = [64, 128], strides = [1, 1]} : vector<512x128xf32> to vector<64x128xf32>
    %14 = arith.maximumf %12, %13 : vector<64x128xf32>
    %15 = vector.extract_strided_slice %11 {offsets = [128, 0], sizes = [64, 128], strides = [1, 1]} : vector<512x128xf32> to vector<64x128xf32>
    %16 = arith.maximumf %14, %15 : vector<64x128xf32>
    %17 = vector.extract_strided_slice %11 {offsets = [192, 0], sizes = [64, 128], strides = [1, 1]} : vector<512x128xf32> to vector<64x128xf32>
    %18 = arith.maximumf %16, %17 : vector<64x128xf32>
    %19 = vector.extract_strided_slice %11 {offsets = [256, 0], sizes = [64, 128], strides = [1, 1]} : vector<512x128xf32> to vector<64x128xf32>
    %20 = arith.maximumf %18, %19 : vector<64x128xf32>
    %21 = vector.extract_strided_slice %11 {offsets = [320, 0], sizes = [64, 128], strides = [1, 1]} : vector<512x128xf32> to vector<64x128xf32>
    %22 = arith.maximumf %20, %21 : vector<64x128xf32>
    %23 = vector.extract_strided_slice %11 {offsets = [384, 0], sizes = [64, 128], strides = [1, 1]} : vector<512x128xf32> to vector<64x128xf32>
    %24 = arith.maximumf %22, %23 : vector<64x128xf32>
    %25 = vector.extract_strided_slice %11 {offsets = [448, 0], sizes = [64, 128], strides = [1, 1]} : vector<512x128xf32> to vector<64x128xf32>
    %26 = arith.maximumf %24, %25 : vector<64x128xf32>
    %c0_8 = arith.constant 0 : index
    %c0_9 = arith.constant 0 : index
    %27 = vector.load %arg5[%c0_8, %c0_9] : memref<64x128xf32, #tpu.memory_space<vmem>>, vector<64x128xf32>
    tpu.vector_store %arg5[%c0_8, %c0_9], %26 {strides = array<i32>} : memref<64x128xf32, #tpu.memory_space<vmem>>, vector<64x128xf32>,
    return
  }
  func.func @transform_0(%arg0: i32) -> (i32, i32) {
    %c0_i32 = arith.constant 0 : i32
    %c0_i32_0 = arith.constant 0 : i32
    %c0_i32_1 = arith.constant 0 : i32
    return %c0_i32, %c0_i32_0 : i32, i32
  }
  func.func @transform_1(%arg0: i32) -> (i32, i32) {
    %c0_i32 = arith.constant 0 : i32
    %c0_i32_0 = arith.constant 0 : i32
    %c0_i32_1 = arith.constant 0 : i32
    return %c0_i32, %c0_i32_0 : i32, i32
  }
  func.func @transform_2(%arg0: i32) -> (i32, i32) {
    %c0_i32 = arith.constant 0 : i32
    %c0_i32_0 = arith.constant 0 : i32
    %c0_i32_1 = arith.constant 0 : i32
    return %c0_i32, %c0_i32_0 : i32, i32
  }
  func.func @transform_3(%arg0: i32) -> (i32, i32) {
    %c0_i32 = arith.constant 0 : i32
    %c0_i32_0 = arith.constant 0 : i32
    %c0_i32_1 = arith.constant 0 : i32
    return %c0_i32, %c0_i32_0 : i32, i32
  }
  func.func @transform_4(%arg0: i32) -> (i32, i32) {
    %c0_i32 = arith.constant 0 : i32
    %c0_i32_0 = arith.constant 0 : i32
    %c0_i32_1 = arith.constant 0 : i32
    return %c0_i32, %c0_i32_0 : i32, i32
  }
}

</mosaic_0001>

<llo_original>
// kernel: tpu_custom_call.1
$region0: #{tpu_custom_call.1}
  #allocation0 [shape = 'u32[]', space=smem, size = 0x4, offset = 0x4, fixed_abs, tag = 'smem constant byte address 0x4 - core index']
  #allocation1 [shape = 'u32[144,128]{1,0:T(1,128)}', space=vmem, size = 0x12000, scoped, tag = 'internal scratch']
  %s0 = inlined_call_operand.vmem [shape: f32[512,20], index: 0, kind: input, shape index: {}]
  %s1 = inlined_call_operand.vmem [shape: bf16[20,128], index: 1, kind: input, shape index: {}]
  %s2 = inlined_call_operand.vmem [shape: f32[1,128], index: 2, kind: input, shape index: {}]
  %s3 = inlined_call_operand.vmem [shape: f32[1,128], index: 3, kind: input, shape index: {}]
  %s4 = inlined_call_operand.hbm [shape: f32[64,128], index: 4, kind: output, shape index: {}]
  %s5 = sld [smem:[#allocation0]]
  $region26: #{tpu_custom_call.1} parent=0
    _
  %s7 = ssub.s32 1, %s5
  %s8 = scalar_select 0, %s7, %s5
  $region1: #{tpu_custom_call.1} parent=0
    #allocation2 [shape = 'u8[32768]{0}', space=vmem, size = 0x8000, scoped, tag = 'output window, operand 0, single buffered']
    #allocation3 [shape = 's32[1]{0}', space=sflag, size = 0x4, scoped, tag = 'scoped memory for tpu_custom_call.1']
    %9 = vsyncpa [#allocation3], 0
    // Predicated region
    $region2: #{tpu_custom_call.1} parent=1 // pred_check
      _
    $region3: #{tpu_custom_call.1} parent=1 // pred_check_branch
      %11 = sbr.rel (0) target = $region5
    $region4: #{tpu_custom_call.1} parent=1 // pred_region
      _
    $region5: #{tpu_custom_call.1} parent=1 // pred_fallthru
      _
    // Predicated region
    $region6: #{tpu_custom_call.1} parent=1 // pred_check
      _
    $region7: #{tpu_custom_call.1} parent=1 // pred_check_branch
      %13 = sbr.rel (0) target = $region9
    $region8: #{tpu_custom_call.1} parent=1 // pred_region
      _
    $region9: #{tpu_custom_call.1} parent=1 // pred_fallthru
      _
    // Predicated region
    $region10: #{tpu_custom_call.1} parent=1 // pred_check
      _
    $region11: #{tpu_custom_call.1} parent=1 // pred_check_branch
      %15 = sbr.rel (0) target = $region13
    $region12: #{tpu_custom_call.1} parent=1 // pred_region
      _
    $region13: #{tpu_custom_call.1} parent=1 // pred_fallthru
      _
    // Predicated region
    $region14: #{tpu_custom_call.1} parent=1 // pred_check
      _
    $region15: #{tpu_custom_call.1} parent=1 // pred_check_branch
      %17 = sbr.rel (0) target = $region17
    $region16: #{tpu_custom_call.1} parent=1 // pred_region
      _
    $region17: #{tpu_custom_call.1} parent=1 // pred_fallthru
      _
    %v19 = vld [vmem:[%s0] sm:$0xff]
    %v20 = vld [vmem:[%s0 + $0x8] sm:$0xff]
    %v21 = vld [vmem:[%s0 + $0x10] sm:$0xff]
    %v22 = vld [vmem:[%s0 + $0x18] sm:$0xff]
    %v23 = vld [vmem:[%s0 + $0x20] sm:$0xff]
    %v24 = vld [vmem:[%s0 + $0x28] sm:$0xff]
    %v25 = vld [vmem:[%s0 + $0x30] sm:$0xff]
    %v26 = vld [vmem:[%s0 + $0x38] sm:$0xff]
    %v27 = vld [vmem:[%s0 + $0x40] sm:$0xff]
    %v28 = vld [vmem:[%s0 + $0x48] sm:$0xff]
    %v29 = vld [vmem:[%s0 + $0x50] sm:$0xff]
    %v30 = vld [vmem:[%s0 + $0x58] sm:$0xff]
    %v31 = vld [vmem:[%s0 + $0x60] sm:$0xff]
    %v32 = vld [vmem:[%s0 + $0x68] sm:$0xff]
    %v33 = vld [vmem:[%s0 + $0x70] sm:$0xff]
    %v34 = vld [vmem:[%s0 + $0x78] sm:$0xff]
    %v35 = vld [vmem:[%s0 + $0x80] sm:$0xff]
    %v36 = vld [vmem:[%s0 + $0x88] sm:$0xff]
    %v37 = vld [vmem:[%s0 + $0x90] sm:$0xff]
    %v38 = vld [vmem:[%s0 + $0x98] sm:$0xff]
    %v39 = vld [vmem:[%s0 + $0xa0] sm:$0xff]
    %v40 = vld [vmem:[%s0 + $0xa8] sm:$0xff]
    %v41 = vld [vmem:[%s0 + $0xb0] sm:$0xff]
    %v42 = vld [vmem:[%s0 + $0xb8] sm:$0xff]
    %v43 = vld [vmem:[%s0 + $0xc0] sm:$0xff]
    %v44 = vld [vmem:[%s0 + $0xc8] sm:$0xff]
    %v45 = vld [vmem:[%s0 + $0xd0] sm:$0xff]
    %v46 = vld [vmem:[%s0 + $0xd8] sm:$0xff]
    %v47 = vld [vmem:[%s0 + $0xe0] sm:$0xff]
    %v48 = vld [vmem:[%s0 + $0xe8] sm:$0xff]
    %v49 = vld [vmem:[%s0 + $0xf0] sm:$0xff]
    %v50 = vld [vmem:[%s0 + $0xf8] sm:$0xff]
    %v51 = vld [vmem:[%s0 + $0x100] sm:$0xff]
    %v52 = vld [vmem:[%s0 + $0x108] sm:$0xff]
    %v53 = vld [vmem:[%s0 + $0x110] sm:$0xff]
    %v54 = vld [vmem:[%s0 + $0x118] sm:$0xff]
    %v55 = vld [vmem:[%s0 + $0x120] sm:$0xff]
    %v56 = vld [vmem:[%s0 + $0x128] sm:$0xff]
    %v57 = vld [vmem:[%s0 + $0x130] sm:$0xff]
    %v58 = vld [vmem:[%s0 + $0x138] sm:$0xff]
    %v59 = vld [vmem:[%s0 + $0x140] sm:$0xff]
    %v60 = vld [vmem:[%s0 + $0x148] sm:$0xff]
    %v61 = vld [vmem:[%s0 + $0x150] sm:$0xff]
    %v62 = vld [vmem:[%s0 + $0x158] sm:$0xff]
    %v63 = vld [vmem:[%s0 + $0x160] sm:$0xff]
    %v64 = vld [vmem:[%s0 + $0x168] sm:$0xff]
    %v65 = vld [vmem:[%s0 + $0x170] sm:$0xff]
    %v66 = vld [vmem:[%s0 + $0x178] sm:$0xff]
    %v67 = vld [vmem:[%s0 + $0x180] sm:$0xff]
    %v68 = vld [vmem:[%s0 + $0x188] sm:$0xff]
    %v69 = vld [vmem:[%s0 + $0x190] sm:$0xff]
    %v70 = vld [vmem:[%s0 + $0x198] sm:$0xff]
    %v71 = vld [vmem:[%s0 + $0x1a0] sm:$0xff]
    %v72 = vld [vmem:[%s0 + $0x1a8] sm:$0xff]
    %v73 = vld [vmem:[%s0 + $0x1b0] sm:$0xff]
    %v74 = vld [vmem:[%s0 + $0x1b8] sm:$0xff]
    %v75 = vld [vmem:[%s0 + $0x1c0] sm:$0xff]
    %v76 = vld [vmem:[%s0 + $0x1c8] sm:$0xff]
    %v77 = vld [vmem:[%s0 + $0x1d0] sm:$0xff]
    %v78 = vld [vmem:[%s0 + $0x1d8] sm:$0xff]
    %v79 = vld [vmem:[%s0 + $0x1e0] sm:$0xff]
    %v80 = vld [vmem:[%s0 + $0x1e8] sm:$0xff]
    %v81 = vld [vmem:[%s0 + $0x1f0] sm:$0xff]
    %v82 = vld [vmem:[%s0 + $0x1f8] sm:$0xff]
    %v83 = vpack.c.bf16 %v20, %v19
    %v84 = vpack.c.bf16 %v22, %v21
    %v85 = vpack.c.bf16 %v24, %v23
    %v86 = vpack.c.bf16 %v26, %v25
    %v87 = vpack.c.bf16 %v28, %v27
    %v88 = vpack.c.bf16 %v30, %v29
    %v89 = vpack.c.bf16 %v32, %v31
    %v90 = vpack.c.bf16 %v34, %v33
    %v91 = vpack.c.bf16 %v36, %v35
    %v92 = vpack.c.bf16 %v38, %v37
    %v93 = vpack.c.bf16 %v40, %v39
    %v94 = vpack.c.bf16 %v42, %v41
    %v95 = vpack.c.bf16 %v44, %v43
    %v96 = vpack.c.bf16 %v46, %v45
    %v97 = vpack.c.bf16 %v48, %v47
    %v98 = vpack.c.bf16 %v50, %v49
    %v99 = vpack.c.bf16 %v52, %v51
    %v100 = vpack.c.bf16 %v54, %v53
    %v101 = vpack.c.bf16 %v56, %v55
    %v102 = vpack.c.bf16 %v58, %v57
    %v103 = vpack.c.bf16 %v60, %v59
    %v104 = vpack.c.bf16 %v62, %v61
    %v105 = vpack.c.bf16 %v64, %v63
    %v106 = vpack.c.bf16 %v66, %v65
    %v107 = vpack.c.bf16 %v68, %v67
    %v108 = vpack.c.bf16 %v70, %v69
    %v109 = vpack.c.bf16 %v72, %v71
    %v110 = vpack.c.bf16 %v74, %v73
    %v111 = vpack.c.bf16 %v76, %v75
    %v112 = vpack.c.bf16 %v78, %v77
    %v113 = vpack.c.bf16 %v80, %v79
    %v114 = vpack.c.bf16 %v82, %v81
    %v115 = vld [vmem:[%s1] sm:$0xf]
    %v116 = vld [vmem:[%s1 + $0x4] sm:$0xf]
    %v117 = vld [vmem:[%s1 + $0x8] sm:$0x3]
    %v121 = vunpack.c.l.b16 %v115
    %v122 = vunpack.c.l.b16 %v116
    %v123 = vunpack.c.l.b16 %v117
    %v124 = vpack.c.b16 %v122, %v121
    %v125 = vpack.c.b16 %v123, %v123
    %vm127 = vcmask 162816
    %v129 = vsel %vm127, %v83, 0
    %v132 = vsel %vm127, %v84, 0
    %v135 = vsel %vm127, %v85, 0
    %v138 = vsel %vm127, %v86, 0
    %v141 = vsel %vm127, %v87, 0
    %v144 = vsel %vm127, %v88, 0
    %v147 = vsel %vm127, %v89, 0
    %v150 = vsel %vm127, %v90, 0
    %v153 = vsel %vm127, %v91, 0
    %v156 = vsel %vm127, %v92, 0
    %v159 = vsel %vm127, %v93, 0
    %v162 = vsel %vm127, %v94, 0
    %v165 = vsel %vm127, %v95, 0
    %v168 = vsel %vm127, %v96, 0
    %v171 = vsel %vm127, %v97, 0
    %v174 = vsel %vm127, %v98, 0
    %v177 = vsel %vm127, %v99, 0
    %v180 = vsel %vm127, %v100, 0
    %v183 = vsel %vm127, %v101, 0
    %v186 = vsel %vm127, %v102, 0
    %v189 = vsel %vm127, %v103, 0
    %v192 = vsel %vm127, %v104, 0
    %v195 = vsel %vm127, %v105, 0
    %v198 = vsel %vm127, %v106, 0
    %v201 = vsel %vm127, %v107, 0
    %v204 = vsel %vm127, %v108, 0
    %v207 = vsel %vm127, %v109, 0
    %v210 = vsel %vm127, %v110, 0
    %v213 = vsel %vm127, %v111, 0
    %v216 = vsel %vm127, %v112, 0
    %v219 = vsel %vm127, %v113, 0
    %v222 = vsel %vm127, %v114, 0
    %vm224 = vcmask 1041408
    %v226 = vsel %vm224, %v125, 0
    %228 = vmatprep.subr.bf16.mxu0 0
    %229 = vmatpush1.bf16.msra.mxu0 0
    %230 = vmatprep.subr.bf16.mxu0 0
    %231 = vmatpush1.bf16.msra.mxu0 0
    %232 = vmatprep.subr.bf16.mxu0 0
    %233 = vmatpush1.bf16.msra.mxu0 0
    %234 = vmatprep.subr.bf16.mxu0 0
    %235 = vmatpush1.bf16.msra.mxu0 0
    %236 = vmatprep.subr.bf16.mxu0 0
    %237 = vmatpush1.bf16.msra.mxu0 0
    %238 = vmatprep.subr.bf16.mxu0 0
    %239 = vmatpush1.bf16.msra.mxu0 0
    %240 = vmatprep.subr.bf16.mxu0 0
    %241 = vmatpush1.bf16.msra.mxu0 %v226
    %242 = vmatprep.subr.bf16.mxu0 0
    %243 = vmatpush1.bf16.msra.mxu0 %v124
    %244 = vmatprep.subr.bf16.mxu0 0
    %245 = vmatpush2.bf16.msra.mxu0 0
    %246 = vmatprep.subr.bf16.mxu0 0
    %247 = vmatpush2.bf16.msra.mxu0 0
    %248 = vmatprep.subr.bf16.mxu0 0
    %249 = vmatpush2.bf16.msra.mxu0 0
    %250 = vmatprep.subr.bf16.mxu0 0
    %251 = vmatpush2.bf16.msra.mxu0 0
    %252 = vmatprep.subr.bf16.mxu0 0
    %253 = vmatpush2.bf16.msra.mxu0 0
    %254 = vmatprep.subr.bf16.mxu0 0
    %255 = vmatpush2.bf16.msra.mxu0 0
    %256 = vmatprep.subr.bf16.mxu0 0
    %257 = vmatpush2.bf16.msra.mxu0 0
    %258 = vmatprep.subr.bf16.mxu0 0
    %259 = vmatpush2.bf16.msra.mxu0 0
    %260 = vmatprep.mubr.bf16.mxu0 0
    %261 = vmatmul.mubr.bf16.gmra.mxu0 %v129
    %v262 = vpop.f32.mrf.mxu0
    %v263 = vadd.f32 0.0, %v262
    %v264 = vpop.f32.mrf.mxu0
    %v265 = vpop.f32.mrf.mxu0
    %v266 = vadd.f32 0.0, %v265
    %v267 = vpop.f32.mrf.mxu0
    %268 = vmatprep.mubr.bf16.mxu0 0
    %269 = vmatmul.mubr.bf16.gmra.mxu0 %v132
    %v270 = vpop.f32.mrf.mxu0
    %v271 = vadd.f32 0.0, %v270
    %v272 = vpop.f32.mrf.mxu0
    %v273 = vpop.f32.mrf.mxu0
    %v274 = vadd.f32 0.0, %v273
    %v275 = vpop.f32.mrf.mxu0
    %276 = vmatprep.mubr.bf16.mxu0 0
    %277 = vmatmul.mubr.bf16.gmra.mxu0 %v135
    %v278 = vpop.f32.mrf.mxu0
    %v279 = vadd.f32 0.0, %v278
    %v280 = vpop.f32.mrf.mxu0
    %v281 = vpop.f32.mrf.mxu0
    %v282 = vadd.f32 0.0, %v281
    %v283 = vpop.f32.mrf.mxu0
    %284 = vmatprep.mubr.bf16.mxu0 0
    %285 = vmatmul.mubr.bf16.gmra.mxu0 %v138
    %v286 = vpop.f32.mrf.mxu0
    %v287 = vadd.f32 0.0, %v286
    %v288 = vpop.f32.mrf.mxu0
    %v289 = vpop.f32.mrf.mxu0
    %v290 = vadd.f32 0.0, %v289
    %v291 = vpop.f32.mrf.mxu0
    %292 = vmatprep.mubr.bf16.mxu0 0
    %293 = vmatmul.mubr.bf16.gmra.mxu0 %v141
    %v294 = vpop.f32.mrf.mxu0
    %v295 = vadd.f32 0.0, %v294
    %v296 = vpop.f32.mrf.mxu0
    %v297 = vpop.f32.mrf.mxu0
    %v298 = vadd.f32 0.0, %v297
    %v299 = vpop.f32.mrf.mxu0
    %300 = vmatprep.mubr.bf16.mxu0 0
    %301 = vmatmul.mubr.bf16.gmra.mxu0 %v144
    %v302 = vpop.f32.mrf.mxu0
    %v303 = vadd.f32 0.0, %v302
    %v304 = vpop.f32.mrf.mxu0
    %v305 = vpop.f32.mrf.mxu0
    %v306 = vadd.f32 0.0, %v305
    %v307 = vpop.f32.mrf.mxu0
    %308 = vmatprep.mubr.bf16.mxu0 0
    %309 = vmatmul.mubr.bf16.gmra.mxu0 %v147
    %v310 = vpop.f32.mrf.mxu0
    %v311 = vadd.f32 0.0, %v310
    %v312 = vpop.f32.mrf.mxu0
    %v313 = vpop.f32.mrf.mxu0
    %v314 = vadd.f32 0.0, %v313
    %v315 = vpop.f32.mrf.mxu0
    %316 = vmatprep.mubr.bf16.mxu0 0
    %317 = vmatmul.mubr.bf16.gmra.mxu0 %v150
    %v318 = vpop.f32.mrf.mxu0
    %v319 = vadd.f32 0.0, %v318
    %v320 = vpop.f32.mrf.mxu0
    %v321 = vpop.f32.mrf.mxu0
    %v322 = vadd.f32 0.0, %v321
    %v323 = vpop.f32.mrf.mxu0
    %324 = vmatprep.mubr.bf16.mxu0 0
    %325 = vmatmul.mubr.bf16.gmra.mxu0 %v153
    %v326 = vpop.f32.mrf.mxu0
    %v327 = vadd.f32 0.0, %v326
    %v328 = vpop.f32.mrf.mxu0
    %v329 = vpop.f32.mrf.mxu0
    %v330 = vadd.f32 0.0, %v329
    %v331 = vpop.f32.mrf.mxu0
    %332 = vmatprep.mubr.bf16.mxu0 0
    %333 = vmatmul.mubr.bf16.gmra.mxu0 %v156
    %v334 = vpop.f32.mrf.mxu0
    %v335 = vadd.f32 0.0, %v334
    %v336 = vpop.f32.mrf.mxu0
    %v337 = vpop.f32.mrf.mxu0
    %v338 = vadd.f32 0.0, %v337
    %v339 = vpop.f32.mrf.mxu0
    %340 = vmatprep.mubr.bf16.mxu0 0
    %341 = vmatmul.mubr.bf16.gmra.mxu0 %v159
    %v342 = vpop.f32.mrf.mxu0
    %v343 = vadd.f32 0.0, %v342
    %v344 = vpop.f32.mrf.mxu0
    %v345 = vpop.f32.mrf.mxu0
    %v346 = vadd.f32 0.0, %v345
    %v347 = vpop.f32.mrf.mxu0
    %348 = vmatprep.mubr.bf16.mxu0 0
    %349 = vmatmul.mubr.bf16.gmra.mxu0 %v162
    %v350 = vpop.f32.mrf.mxu0
    %v351 = vadd.f32 0.0, %v350
    %v352 = vpop.f32.mrf.mxu0
    %v353 = vpop.f32.mrf.mxu0
    %v354 = vadd.f32 0.0, %v353
    %v355 = vpop.f32.mrf.mxu0
    %356 = vmatprep.mubr.bf16.mxu0 0
    %357 = vmatmul.mubr.bf16.gmra.mxu0 %v165
    %v358 = vpop.f32.mrf.mxu0
    %v359 = vadd.f32 0.0, %v358
    %v360 = vpop.f32.mrf.mxu0
    %v361 = vpop.f32.mrf.mxu0
    %v362 = vadd.f32 0.0, %v361
    %v363 = vpop.f32.mrf.mxu0
    %364 = vmatprep.mubr.bf16.mxu0 0
    %365 = vmatmul.mubr.bf16.gmra.mxu0 %v168
    %v366 = vpop.f32.mrf.mxu0
    %v367 = vadd.f32 0.0, %v366
    %v368 = vpop.f32.mrf.mxu0
    %v369 = vpop.f32.mrf.mxu0
    %v370 = vadd.f32 0.0, %v369
    %v371 = vpop.f32.mrf.mxu0
    %372 = vmatprep.mubr.bf16.mxu0 0
    %373 = vmatmul.mubr.bf16.gmra.mxu0 %v171
    %v374 = vpop.f32.mrf.mxu0
    %v375 = vadd.f32 0.0, %v374
    %v376 = vpop.f32.mrf.mxu0
    %v377 = vpop.f32.mrf.mxu0
    %v378 = vadd.f32 0.0, %v377
    %v379 = vpop.f32.mrf.mxu0
    %380 = vmatprep.mubr.bf16.mxu0 0
    %381 = vmatmul.mubr.bf16.gmra.mxu0 %v174
    %v382 = vpop.f32.mrf.mxu0
    %v383 = vadd.f32 0.0, %v382
    %v384 = vpop.f32.mrf.mxu0
    %v385 = vpop.f32.mrf.mxu0
    %v386 = vadd.f32 0.0, %v385
    %v387 = vpop.f32.mrf.mxu0
    %388 = vmatprep.mubr.bf16.mxu0 0
    %389 = vmatmul.mubr.bf16.gmra.mxu0 %v177
    %v390 = vpop.f32.mrf.mxu0
    %v391 = vadd.f32 0.0, %v390
    %v392 = vpop.f32.mrf.mxu0
    %v393 = vpop.f32.mrf.mxu0
    %v394 = vadd.f32 0.0, %v393
    %v395 = vpop.f32.mrf.mxu0
    %396 = vmatprep.mubr.bf16.mxu0 0
    %397 = vmatmul.mubr.bf16.gmra.mxu0 %v180
    %v398 = vpop.f32.mrf.mxu0
    %v399 = vadd.f32 0.0, %v398
    %v400 = vpop.f32.mrf.mxu0
    %v401 = vpop.f32.mrf.mxu0
    %v402 = vadd.f32 0.0, %v401
    %v403 = vpop.f32.mrf.mxu0
    %404 = vmatprep.mubr.bf16.mxu0 0
    %405 = vmatmul.mubr.bf16.gmra.mxu0 %v183
    %v406 = vpop.f32.mrf.mxu0
    %v407 = vadd.f32 0.0, %v406
    %v408 = vpop.f32.mrf.mxu0
    %v409 = vpop.f32.mrf.mxu0
    %v410 = vadd.f32 0.0, %v409
    %v411 = vpop.f32.mrf.mxu0
    %412 = vmatprep.mubr.bf16.mxu0 0
    %413 = vmatmul.mubr.bf16.gmra.mxu0 %v186
    %v414 = vpop.f32.mrf.mxu0
    %v415 = vadd.f32 0.0, %v414
    %v416 = vpop.f32.mrf.mxu0
    %v417 = vpop.f32.mrf.mxu0
    %v418 = vadd.f32 0.0, %v417
    %v419 = vpop.f32.mrf.mxu0
    %420 = vmatprep.mubr.bf16.mxu0 0
    %421 = vmatmul.mubr.bf16.gmra.mxu0 %v189
    %v422 = vpop.f32.mrf.mxu0
    %v423 = vadd.f32 0.0, %v422
    %v424 = vpop.f32.mrf.mxu0
    %v425 = vpop.f32.mrf.mxu0
    %v426 = vadd.f32 0.0, %v425
    %v427 = vpop.f32.mrf.mxu0
    %428 = vmatprep.mubr.bf16.mxu0 0
    %429 = vmatmul.mubr.bf16.gmra.mxu0 %v192
    %v430 = vpop.f32.mrf.mxu0
    %v431 = vadd.f32 0.0, %v430
    %v432 = vpop.f32.mrf.mxu0
    %v433 = vpop.f32.mrf.mxu0
    %v434 = vadd.f32 0.0, %v433
    %v435 = vpop.f32.mrf.mxu0
    %436 = vmatprep.mubr.bf16.mxu0 0
    %437 = vmatmul.mubr.bf16.gmra.mxu0 %v195
    %v438 = vpop.f32.mrf.mxu0
    %v439 = vadd.f32 0.0, %v438
    %v440 = vpop.f32.mrf.mxu0
    %v441 = vpop.f32.mrf.mxu0
    %v442 = vadd.f32 0.0, %v441
    %v443 = vpop.f32.mrf.mxu0
    %444 = vmatprep.mubr.bf16.mxu0 0
    %445 = vmatmul.mubr.bf16.gmra.mxu0 %v198
    %v446 = vpop.f32.mrf.mxu0
    %v447 = vadd.f32 0.0, %v446
    %v448 = vpop.f32.mrf.mxu0
    %v449 = vpop.f32.mrf.mxu0
    %v450 = vadd.f32 0.0, %v449
    %v451 = vpop.f32.mrf.mxu0
    %452 = vmatprep.mubr.bf16.mxu0 0
    %453 = vmatmul.mubr.bf16.gmra.mxu0 %v201
    %v454 = vpop.f32.mrf.mxu0
    %v455 = vadd.f32 0.0, %v454
    %v456 = vpop.f32.mrf.mxu0
    %v457 = vpop.f32.mrf.mxu0
    %v458 = vadd.f32 0.0, %v457
    %v459 = vpop.f32.mrf.mxu0
    %460 = vmatprep.mubr.bf16.mxu0 0
    %461 = vmatmul.mubr.bf16.gmra.mxu0 %v204
    %v462 = vpop.f32.mrf.mxu0
    %v463 = vadd.f32 0.0, %v462
    %v464 = vpop.f32.mrf.mxu0
    %v465 = vpop.f32.mrf.mxu0
    %v466 = vadd.f32 0.0, %v465
    %v467 = vpop.f32.mrf.mxu0
    %468 = vmatprep.mubr.bf16.mxu0 0
    %469 = vmatmul.mubr.bf16.gmra.mxu0 %v207
    %v470 = vpop.f32.mrf.mxu0
    %v471 = vadd.f32 0.0, %v470
    %v472 = vpop.f32.mrf.mxu0
    %v473 = vpop.f32.mrf.mxu0
    %v474 = vadd.f32 0.0, %v473
    %v475 = vpop.f32.mrf.mxu0
    %476 = vmatprep.mubr.bf16.mxu0 0
    %477 = vmatmul.mubr.bf16.gmra.mxu0 %v210
    %v478 = vpop.f32.mrf.mxu0
    %v479 = vadd.f32 0.0, %v478
    %v480 = vpop.f32.mrf.mxu0
    %v481 = vpop.f32.mrf.mxu0
    %v482 = vadd.f32 0.0, %v481
    %v483 = vpop.f32.mrf.mxu0
    %484 = vmatprep.mubr.bf16.mxu0 0
    %485 = vmatmul.mubr.bf16.gmra.mxu0 %v213
    %v486 = vpop.f32.mrf.mxu0
    %v487 = vadd.f32 0.0, %v486
    %v488 = vpop.f32.mrf.mxu0
    %v489 = vpop.f32.mrf.mxu0
    %v490 = vadd.f32 0.0, %v489
    %v491 = vpop.f32.mrf.mxu0
    %492 = vmatprep.mubr.bf16.mxu0 0
    %493 = vmatmul.mubr.bf16.gmra.mxu0 %v216
    %v494 = vpop.f32.mrf.mxu0
    %v495 = vadd.f32 0.0, %v494
    %v496 = vpop.f32.mrf.mxu0
    %v497 = vpop.f32.mrf.mxu0
    %v498 = vadd.f32 0.0, %v497
    %v499 = vpop.f32.mrf.mxu0
    %500 = vmatprep.mubr.bf16.mxu0 0
    %501 = vmatmul.mubr.bf16.gmra.mxu0 %v219
    %v502 = vpop.f32.mrf.mxu0
    %v503 = vadd.f32 0.0, %v502
    %v504 = vpop.f32.mrf.mxu0
    %v505 = vpop.f32.mrf.mxu0
    %v506 = vadd.f32 0.0, %v505
    %v507 = vpop.f32.mrf.mxu0
    %508 = vmatprep.mubr.bf16.mxu0 0
    %509 = vmatmul.mubr.bf16.gmra.mxu0 %v222
    %v510 = vpop.f32.mrf.mxu0
    %v511 = vadd.f32 0.0, %v510
    %v512 = vpop.f32.mrf.mxu0
    %v513 = vpop.f32.mrf.mxu0
    %v514 = vadd.f32 0.0, %v513
    %v515 = vpop.f32.mrf.mxu0
    %516 = vdwg.mxu0
    %v517 = vld [vmem:[%s2] sm:$0x1]
    %v519 = vlaneseq
    %v520 = vshrl.u32 %v519, 7
    %v521 = vsub.s32 0, %v520
    %v522 = vrot.slane %v517, %v521
    %v524 = vmul.f32 %v263, %v522
    %v525 = vmul.f32 %v266, %v522
    %v526 = vmul.f32 %v271, %v522
    %v527 = vmul.f32 %v274, %v522
    %v528 = vmul.f32 %v279, %v522
    %v529 = vmul.f32 %v282, %v522
    %v530 = vmul.f32 %v287, %v522
    %v531 = vmul.f32 %v290, %v522
    %v532 = vmul.f32 %v295, %v522
    %v533 = vmul.f32 %v298, %v522
    %v534 = vmul.f32 %v303, %v522
    %v535 = vmul.f32 %v306, %v522
    %v536 = vmul.f32 %v311, %v522
    %v537 = vmul.f32 %v314, %v522
    %v538 = vmul.f32 %v319, %v522
    %v539 = vmul.f32 %v322, %v522
    %v540 = vmul.f32 %v327, %v522
    %v541 = vmul.f32 %v330, %v522
    %v542 = vmul.f32 %v335, %v522
    %v543 = vmul.f32 %v338, %v522
    %v544 = vmul.f32 %v343, %v522
    %v545 = vmul.f32 %v346, %v522
    %v546 = vmul.f32 %v351, %v522
    %v547 = vmul.f32 %v354, %v522
    %v548 = vmul.f32 %v359, %v522
    %v549 = vmul.f32 %v362, %v522
    %v550 = vmul.f32 %v367, %v522
    %v551 = vmul.f32 %v370, %v522
    %v552 = vmul.f32 %v375, %v522
    %v553 = vmul.f32 %v378, %v522
    %v554 = vmul.f32 %v383, %v522
    %v555 = vmul.f32 %v386, %v522
    %v556 = vmul.f32 %v391, %v522
    %v557 = vmul.f32 %v394, %v522
    %v558 = vmul.f32 %v399, %v522
    %v559 = vmul.f32 %v402, %v522
    %v560 = vmul.f32 %v407, %v522
    %v561 = vmul.f32 %v410, %v522
    %v562 = vmul.f32 %v415, %v522
    %v563 = vmul.f32 %v418, %v522
    %v564 = vmul.f32 %v423, %v522
    %v565 = vmul.f32 %v426, %v522
    %v566 = vmul.f32 %v431, %v522
    %v567 = vmul.f32 %v434, %v522
    %v568 = vmul.f32 %v439, %v522
    %v569 = vmul.f32 %v442, %v522
    %v570 = vmul.f32 %v447, %v522
    %v571 = vmul.f32 %v450, %v522
    %v572 = vmul.f32 %v455, %v522
    %v573 = vmul.f32 %v458, %v522
    %v574 = vmul.f32 %v463, %v522
    %v575 = vmul.f32 %v466, %v522
    %v576 = vmul.f32 %v471, %v522
    %v577 = vmul.f32 %v474, %v522
    %v578 = vmul.f32 %v479, %v522
    %v579 = vmul.f32 %v482, %v522
    %v580 = vmul.f32 %v487, %v522
    %v581 = vmul.f32 %v490, %v522
    %v582 = vmul.f32 %v495, %v522
    %v583 = vmul.f32 %v498, %v522
    %v584 = vmul.f32 %v503, %v522
    %v585 = vmul.f32 %v506, %v522
    %v586 = vmul.f32 %v511, %v522
    %v587 = vmul.f32 %v514, %v522
    %v588 = vld [vmem:[%s3] sm:$0x1]
    %v590 = vlaneseq
    %v591 = vshrl.u32 %v590, 7
    %v592 = vsub.s32 0, %v591
    %v593 = vrot.slane %v588, %v592
    %v595 = vadd.f32 %v524, %v593
    %v596 = vadd.f32 %v525, %v593
    %v597 = vadd.f32 %v526, %v593
    %v598 = vadd.f32 %v527, %v593
    %v599 = vadd.f32 %v528, %v593
    %v600 = vadd.f32 %v529, %v593
    %v601 = vadd.f32 %v530, %v593
    %v602 = vadd.f32 %v531, %v593
    %v603 = vadd.f32 %v532, %v593
    %v604 = vadd.f32 %v533, %v593
    %v605 = vadd.f32 %v534, %v593
    %v606 = vadd.f32 %v535, %v593
    %v607 = vadd.f32 %v536, %v593
    %v608 = vadd.f32 %v537, %v593
    %v609 = vadd.f32 %v538, %v593
    %v610 = vadd.f32 %v539, %v593
    %v611 = vadd.f32 %v540, %v593
    %v612 = vadd.f32 %v541, %v593
    %v613 = vadd.f32 %v542, %v593
    %v614 = vadd.f32 %v543, %v593
    %v615 = vadd.f32 %v544, %v593
    %v616 = vadd.f32 %v545, %v593
    %v617 = vadd.f32 %v546, %v593
    %v618 = vadd.f32 %v547, %v593
    %v619 = vadd.f32 %v548, %v593
    %v620 = vadd.f32 %v549, %v593
    %v621 = vadd.f32 %v550, %v593
    %v622 = vadd.f32 %v551, %v593
    %v623 = vadd.f32 %v552, %v593
    %v624 = vadd.f32 %v553, %v593
    %v625 = vadd.f32 %v554, %v593
    %v626 = vadd.f32 %v555, %v593
    %v627 = vadd.f32 %v556, %v593
    %v628 = vadd.f32 %v557, %v593
    %v629 = vadd.f32 %v558, %v593
    %v630 = vadd.f32 %v559, %v593
    %v631 = vadd.f32 %v560, %v593
    %v632 = vadd.f32 %v561, %v593
    %v633 = vadd.f32 %v562, %v593
    %v634 = vadd.f32 %v563, %v593
    %v635 = vadd.f32 %v564, %v593
    %v636 = vadd.f32 %v565, %v593
    %v637 = vadd.f32 %v566, %v593
    %v638 = vadd.f32 %v567, %v593
    %v639 = vadd.f32 %v568, %v593
    %v640 = vadd.f32 %v569, %v593
    %v641 = vadd.f32 %v570, %v593
    %v642 = vadd.f32 %v571, %v593
    %v643 = vadd.f32 %v572, %v593
    %v644 = vadd.f32 %v573, %v593
    %v645 = vadd.f32 %v574, %v593
    %v646 = vadd.f32 %v575, %v593
    %v647 = vadd.f32 %v576, %v593
    %v648 = vadd.f32 %v577, %v593
    %v649 = vadd.f32 %v578, %v593
    %v650 = vadd.f32 %v579, %v593
    %v651 = vadd.f32 %v580, %v593
    %v652 = vadd.f32 %v581, %v593
    %v653 = vadd.f32 %v582, %v593
    %v654 = vadd.f32 %v583, %v593
    %v655 = vadd.f32 %v584, %v593
    %v656 = vadd.f32 %v585, %v593
    %v657 = vadd.f32 %v586, %v593
    %v658 = vadd.f32 %v587, %v593
    %v659 = vmax.f32 %v595, 0.0
    %v660 = vmax.f32 %v596, 0.0
    %v661 = vmax.f32 %v597, 0.0
    %v662 = vmax.f32 %v598, 0.0
    %v663 = vmax.f32 %v599, 0.0
    %v664 = vmax.f32 %v600, 0.0
    %v665 = vmax.f32 %v601, 0.0
    %v666 = vmax.f32 %v602, 0.0
    %v667 = vmax.f32 %v603, 0.0
    %v668 = vmax.f32 %v604, 0.0
    %v669 = vmax.f32 %v605, 0.0
    %v670 = vmax.f32 %v606, 0.0
    %v671 = vmax.f32 %v607, 0.0
    %v672 = vmax.f32 %v608, 0.0
    %v673 = vmax.f32 %v609, 0.0
    %v674 = vmax.f32 %v610, 0.0
    %v675 = vmax.f32 %v611, 0.0
    %v676 = vmax.f32 %v612, 0.0
    %v677 = vmax.f32 %v613, 0.0
    %v678 = vmax.f32 %v614, 0.0
    %v679 = vmax.f32 %v615, 0.0
    %v680 = vmax.f32 %v616, 0.0
    %v681 = vmax.f32 %v617, 0.0
    %v682 = vmax.f32 %v618, 0.0
    %v683 = vmax.f32 %v619, 0.0
    %v684 = vmax.f32 %v620, 0.0
    %v685 = vmax.f32 %v621, 0.0
    %v686 = vmax.f32 %v622, 0.0
    %v687 = vmax.f32 %v623, 0.0
    %v688 = vmax.f32 %v624, 0.0
    %v689 = vmax.f32 %v625, 0.0
    %v690 = vmax.f32 %v626, 0.0
    %v691 = vmax.f32 %v627, 0.0
    %v692 = vmax.f32 %v628, 0.0
    %v693 = vmax.f32 %v629, 0.0
    %v694 = vmax.f32 %v630, 0.0
    %v695 = vmax.f32 %v631, 0.0
    %v696 = vmax.f32 %v632, 0.0
    %v697 = vmax.f32 %v633, 0.0
    %v698 = vmax.f32 %v634, 0.0
    %v699 = vmax.f32 %v635, 0.0
    %v700 = vmax.f32 %v636, 0.0
    %v701 = vmax.f32 %v637, 0.0
    %v702 = vmax.f32 %v638, 0.0
    %v703 = vmax.f32 %v639, 0.0
    %v704 = vmax.f32 %v640, 0.0
    %v705 = vmax.f32 %v641, 0.0
    %v706 = vmax.f32 %v642, 0.0
    %v707 = vmax.f32 %v643, 0.0
    %v708 = vmax.f32 %v644, 0.0
    %v709 = vmax.f32 %v645, 0.0
    %v710 = vmax.f32 %v646, 0.0
    %v711 = vmax.f32 %v647, 0.0
    %v712 = vmax.f32 %v648, 0.0
    %v713 = vmax.f32 %v649, 0.0
    %v714 = vmax.f32 %v650, 0.0
    %v715 = vmax.f32 %v651, 0.0
    %v716 = vmax.f32 %v652, 0.0
    %v717 = vmax.f32 %v653, 0.0
    %v718 = vmax.f32 %v654, 0.0
    %v719 = vmax.f32 %v655, 0.0
    %v720 = vmax.f32 %v656, 0.0
    %v721 = vmax.f32 %v657, 0.0
    %v722 = vmax.f32 %v658, 0.0
    %v723 = vmax.f32 %v659, %v667
    %v724 = vmax.f32 %v660, %v668
    %v725 = vmax.f32 %v661, %v669
    %v726 = vmax.f32 %v662, %v670
    %v727 = vmax.f32 %v663, %v671
    %v728 = vmax.f32 %v664, %v672
    %v729 = vmax.f32 %v665, %v673
    %v730 = vmax.f32 %v666, %v674
    %v731 = vmax.f32 %v723, %v675
    %v732 = vmax.f32 %v724, %v676
    %v733 = vmax.f32 %v725, %v677
    %v734 = vmax.f32 %v726, %v678
    %v735 = vmax.f32 %v727, %v679
    %v736 = vmax.f32 %v728, %v680
    %v737 = vmax.f32 %v729, %v681
    %v738 = vmax.f32 %v730, %v682
    %v739 = vmax.f32 %v731, %v683
    %v740 = vmax.f32 %v732, %v684
    %v741 = vmax.f32 %v733, %v685
    %v742 = vmax.f32 %v734, %v686
    %v743 = vmax.f32 %v735, %v687
    %v744 = vmax.f32 %v736, %v688
    %v745 = vmax.f32 %v737, %v689
    %v746 = vmax.f32 %v738, %v690
    %v747 = vmax.f32 %v739, %v691
    %v748 = vmax.f32 %v740, %v692
    %v749 = vmax.f32 %v741, %v693
    %v750 = vmax.f32 %v742, %v694
    %v751 = vmax.f32 %v743, %v695
    %v752 = vmax.f32 %v744, %v696
    %v753 = vmax.f32 %v745, %v697
    %v754 = vmax.f32 %v746, %v698
    %v755 = vmax.f32 %v747, %v699
    %v756 = vmax.f32 %v748, %v700
    %v757 = vmax.f32 %v749, %v701
    %v758 = vmax.f32 %v750, %v702
    %v759 = vmax.f32 %v751, %v703
    %v760 = vmax.f32 %v752, %v704
    %v761 = vmax.f32 %v753, %v705
    %v762 = vmax.f32 %v754, %v706
    %v763 = vmax.f32 %v755, %v707
    %v764 = vmax.f32 %v756, %v708
    %v765 = vmax.f32 %v757, %v709
    %v766 = vmax.f32 %v758, %v710
    %v767 = vmax.f32 %v759, %v711
    %v768 = vmax.f32 %v760, %v712
    %v769 = vmax.f32 %v761, %v713
    %v770 = vmax.f32 %v762, %v714
    %v771 = vmax.f32 %v763, %v715
    %v772 = vmax.f32 %v764, %v716
    %v773 = vmax.f32 %v765, %v717
    %v774 = vmax.f32 %v766, %v718
    %v775 = vmax.f32 %v767, %v719
    %v776 = vmax.f32 %v768, %v720
    %v777 = vmax.f32 %v769, %v721
    %v778 = vmax.f32 %v770, %v722
    %779 = vst [vmem:[#allocation2] sm:$0xff] %v771
    %780 = vst [vmem:[#allocation2 + $0x8] sm:$0xff] %v772
    %781 = vst [vmem:[#allocation2 + $0x10] sm:$0xff] %v773
    %782 = vst [vmem:[#allocation2 + $0x18] sm:$0xff] %v774
    %783 = vst [vmem:[#allocation2 + $0x20] sm:$0xff] %v775
    %784 = vst [vmem:[#allocation2 + $0x28] sm:$0xff] %v776
    %785 = vst [vmem:[#allocation2 + $0x30] sm:$0xff] %v777
    %786 = vst [vmem:[#allocation2 + $0x38] sm:$0xff] %v778
    // Predicated region
    $region18: #{tpu_custom_call.1} parent=1 // pred_check
      _
    $region19: #{tpu_custom_call.1} parent=1 // pred_check_branch
      %788 = sbr.rel (0) target = $region21
    $region20: #{tpu_custom_call.1} parent=1 // pred_region
      %s790 = ssub.s32 1024, 1024
      %791 = vsyncadd [#allocation3], %s790
      %s792 = sshll.u32 [#allocation2], 4
      %s793 = int_to_ptr.vmem [resolvable:$true] %s792
      %798 = dma.vmem_to_hbm [thread:$0]  %s793, 1024, %s4, [#allocation3], 128, 128, 8
    $region21: #{tpu_custom_call.1} parent=1 // pred_fallthru
      _
    // Predicated region
    $region22: #{tpu_custom_call.1} parent=1 // pred_check
      _
    $region23: #{tpu_custom_call.1} parent=1 // pred_check_branch
      %800 = sbr.rel (0) target = $region25
    $region24: #{tpu_custom_call.1} parent=1 // pred_region
      %801 = dma.done [#allocation3], 1024
    $region25: #{tpu_custom_call.1} parent=1 // pred_fallthru
      _
    %802 = vsyncpa [#allocation3], 1

</llo_original>
